<compile_context>
chip_gen: v6e
topology: v6e:2x2x1
jax: 0.10.0
libtpu: 0.0.40
codegen_flags: <defaults>
</compile_context>

<pallas_src>
import jax
import jax.numpy as jnp
from jax.experimental import pallas as pl
from jax.experimental.pallas import tpu as pltpu

PAIR_INFO_PRIMITIVES = ("zero", "identity", "fc", "mlp", "layer_norm")

_LN_EPS = 1e-5            # torch.nn.LayerNorm default
_SWEET_TM = 1024          # measured 512-2048 row-tile sweet spot
_MIN_PALLAS_ROWS = 128    # below this, launch overhead dominates -> plain XLA


# ----------------------------- Pallas kernels ------------------------------ #

def _fc_kernel(x_ref, w_ref, b_ref, o_ref):
    # y = x @ W + b  (nn.Linear semantics, W stored (in, out), bf16 operands,
    # f32 MXU accumulation; bias-add in f32).
    x = x_ref[...].astype(jnp.bfloat16)
    y = jnp.dot(x, w_ref[...], preferred_element_type=jnp.float32)
    o_ref[...] = (y + b_ref[...]).astype(o_ref.dtype)


def _mlp_kernel(x_ref, w1_ref, b1_ref, w2_ref, b2_ref, o_ref):
    # y = relu(x @ W1 + b1) @ W2 + b2, fused.  Matmul operands in bf16,
    # elementwise (bias/ReLU) in f32 (v5e-safe).
    x = x_ref[...].astype(jnp.bfloat16)
    h = jnp.dot(x, w1_ref[...], preferred_element_type=jnp.float32)
    h = jnp.maximum(h + b1_ref[...], 0.0)
    y = jnp.dot(h.astype(jnp.bfloat16), w2_ref[...],
                preferred_element_type=jnp.float32)
    o_ref[...] = (y + b2_ref[...]).astype(o_ref.dtype)


def _layer_norm_kernel(x_ref, g_ref, b_ref, o_ref):
    # LayerNorm over the last axis, single-pass statistics in f32,
    # variance clamped at 0 before rsqrt.
    x = x_ref[...].astype(jnp.float32)
    inv_h = jnp.float32(1.0 / x.shape[-1])
    s = jnp.sum(x, axis=-1, keepdims=True)
    sq = jnp.sum(x * x, axis=-1, keepdims=True)
    mean = s * inv_h
    var = jnp.maximum(sq * inv_h - mean * mean, 0.0)
    inv = jax.lax.rsqrt(var + _LN_EPS)
    o_ref[...] = ((x - mean) * inv * g_ref[...] + b_ref[...]).astype(o_ref.dtype)


# --------------------------- tiling / dispatch ------------------------------ #

def _vmem_limit_bytes():
    """Scoped-VMEM limit from the device generation (half of physical)."""
    try:
        phys = int(pltpu.get_tpu_info().vmem_capacity_bytes)
    except Exception:  # conservative if the query is unavailable
        phys = 64 * 1024 * 1024  # v7x per-TC size
    return min(phys // 2, 64 * 1024 * 1024)


def _pick_tm(m_rows, hidden_dim, per_row_mult, weight_bytes, vmem_limit):
    """Row-tile size; returns None if the resident weights don't fit VMEM."""
    # Pallas double-buffers every input, including the "resident" params.
    avail = vmem_limit - 2 * weight_bytes
    if avail < (1 << 20):
        return None
    per_row = per_row_mult * hidden_dim * 4        # f32 bytes per tile row
    fit_tm = max(8, avail // per_row)
    tm_target = max(8, min(fit_tm, _SWEET_TM))
    # >= 2 grid steps for software pipelining, even count so both v7x TCs
    # get work under dimension_semantics=("parallel",).
    g = max(2, pl.cdiv(m_rows, tm_target))
    if g % 2:
        g += 1
    tm = -(-m_rows // g)                           # ceil(m_rows / g)
    tm = max(8, ((tm + 7) // 8) * 8)               # (8, 128) sublane alignment
    return tm


def _call_tiled(kernel, x2d, params, per_row_mult):
    """Row-tiled pallas_call: x/out tiled over rows, params VMEM-resident.

    Returns None (caller falls back to plain XLA) when the double-buffered
    resident weights do not fit the VMEM budget.
    """
    M, H = x2d.shape
    vmem_limit = _vmem_limit_bytes()
    weight_bytes = sum(int(p.size) * p.dtype.itemsize for p in params)
    tm = _pick_tm(M, H, per_row_mult, weight_bytes, vmem_limit)
    if tm is None:
        return None

    grid = (pl.cdiv(M, tm),)
    in_specs = [pl.BlockSpec((tm, H), lambda i: (i, 0))]
    for p in params:
        r, c = p.shape
        in_specs.append(pl.BlockSpec((r, c), lambda i: (0, 0)))

    return pl.pallas_call(
        kernel,
        out_shape=jax.ShapeDtypeStruct((M, H), x2d.dtype),
        grid=grid,
        in_specs=in_specs,
        out_specs=pl.BlockSpec((tm, H), lambda i: (i, 0)),
        compiler_params=pltpu.CompilerParams(
            dimension_semantics=("parallel",),
            vmem_limit_bytes=vmem_limit),
    )(x2d, *params)


class PairInfoOpBlock:
    """JAX/Pallas re-implementation of PairInfoOpBlock.

    Holds one parameter set per primitive; forward(pair_info_embed, primitive)
    dispatches to the matching op (same semantics as the PyTorch ModuleList
    indexed by PAIR_INFO_PRIMITIVES.index(primitive)).
    """

    def __init__(self, hidden_dim, batch_pair_num, key):
        self.hidden_dim = hidden_dim
        self.batch_pair_num = batch_pair_num
        k = jax.random.split(key, 6)
        scale = 1.0 / jnp.sqrt(jnp.float32(hidden_dim))

        def w(kk):  # bf16 matmul operands (MXU peak dtype on v5e/v6e/v7x)
            return (jax.random.normal(kk, (hidden_dim, hidden_dim), jnp.float32)
                    * scale).astype(jnp.bfloat16)

        def b(kk):  # biases stay f32 (elementwise path)
            return jax.random.normal(kk, (1, hidden_dim), jnp.float32) * 0.01

        # 'fc' params
        self.fc_w, self.fc_b = w(k[0]), b(k[1])
        # 'mlp' params
        self.mlp_w1, self.mlp_b1 = w(k[2]), b(k[3])
        self.mlp_w2, self.mlp_b2 = w(k[4]), b(k[5])
        # 'layer_norm' params (torch defaults: gamma=1, beta=0)
        self.ln_g = jnp.ones((1, hidden_dim), jnp.float32)
        self.ln_b = jnp.zeros((1, hidden_dim), jnp.float32)

    # -------- plain-XLA fallbacks (lane-sparse / tiny shapes, weight OOM) ---- #

    def _fc_ref(self, x2d):
        y = jnp.dot(x2d.astype(jnp.bfloat16), self.fc_w,
                    preferred_element_type=jnp.float32)
        return (y + self.fc_b).astype(x2d.dtype)

    def _mlp_ref(self, x2d):
        h = jnp.dot(x2d.astype(jnp.bfloat16), self.mlp_w1,
                    preferred_element_type=jnp.float32)
        h = jnp.maximum(h + self.mlp_b1, 0.0)
        y = jnp.dot(h.astype(jnp.bfloat16), self.mlp_w2,
                    preferred_element_type=jnp.float32)
        return (y + self.mlp_b2).astype(x2d.dtype)

    def _ln_ref(self, x2d):
        x = x2d.astype(jnp.float32)
        mean = jnp.mean(x, axis=-1, keepdims=True)
        var = jnp.mean((x - mean) ** 2, axis=-1, keepdims=True)
        y = (x - mean) * jax.lax.rsqrt(var + _LN_EPS) * self.ln_g + self.ln_b
        return y.astype(x2d.dtype)

    # ------------------------------- forward -------------------------------- #

    def forward(self, pair_info_embed, primitive):
        assert primitive in PAIR_INFO_PRIMITIVES, primitive
        B, P, H = pair_info_embed.shape
        assert H == self.hidden_dim and P == self.batch_pair_num

        # 'zero' / 'identity' are pure overhead as kernels: wrapper-level.
        if primitive == "zero":
            return jnp.zeros_like(pair_info_embed)
        if primitive == "identity":
            return pair_info_embed

        x2d = pair_info_embed.reshape(B * P, H)
        M = B * P
        # Lane-density / launch-overhead gate: Pallas only when the last dim
        # fills full 128-lane vregs and there are enough rows to pipeline.
        use_pallas = (H % 128 == 0) and (M >= _MIN_PALLAS_ROWS)

        y2d = None
        if primitive == "fc":
            if use_pallas:
                y2d = _call_tiled(_fc_kernel, x2d,
                                  (self.fc_w, self.fc_b), per_row_mult=6)
            if y2d is None:
                y2d = self._fc_ref(x2d)
        elif primitive == "mlp":
            if use_pallas:
                y2d = _call_tiled(_mlp_kernel, x2d,
                                  (self.mlp_w1, self.mlp_b1,
                                   self.mlp_w2, self.mlp_b2), per_row_mult=8)
            if y2d is None:
                y2d = self._mlp_ref(x2d)
        elif primitive == "layer_norm":
            if use_pallas:
                y2d = _call_tiled(_layer_norm_kernel, x2d,
                                  (self.ln_g, self.ln_b), per_row_mult=5)
            if y2d is None:
                y2d = self._ln_ref(x2d)
        else:  # unreachable
            raise ValueError(primitive)

        return y2d.reshape(B, P, H)

    __call__ = forward


# ---------------------------------- main ----------------------------------- #

if __name__ == "__main__":
    # Lane-dense demo shape: H=128 (full 128-lane vregs), B*P=256 rows so the
    # row grid has 2 even steps (pipelined, both v7x TCs busy).
    batch = 2
    batch_pair_num = 128
    hidden_dim = 128

    key = jax.random.PRNGKey(0)
    k_param, k_x, k_small = jax.random.split(key, 3)

    block = PairInfoOpBlock(hidden_dim, batch_pair_num, k_param)
    pair_info_embed = jax.random.normal(
        k_x, (batch, batch_pair_num, hidden_dim), jnp.float32)

    # Exercise every primitive branch once (fc/mlp/layer_norm take the Pallas path).
    outs = {}
    for prim in PAIR_INFO_PRIMITIVES:
        outs[prim] = block(pair_info_embed, prim)
    for o in outs.values():
        jax.block_until_ready(o)

    # Sanity checks against plain-JAX references (same bf16 weights).
    x2d = pair_info_embed.reshape(-1, hidden_dim)
    shape3 = pair_info_embed.shape

    assert jnp.allclose(outs["fc"], block._fc_ref(x2d).reshape(shape3),
                        atol=1e-3, rtol=1e-3)
    assert jnp.allclose(outs["mlp"], block._mlp_ref(x2d).reshape(shape3),
                        atol=1e-3, rtol=1e-3)
    assert jnp.allclose(outs["layer_norm"], block._ln_ref(x2d).reshape(shape3),
                        atol=1e-4, rtol=1e-4)
    assert jnp.allclose(outs["identity"], pair_info_embed)
    assert jnp.allclose(outs["zero"], 0.0)

    # Tiny / lane-sparse config (the original demo size, H=32, B*P=16) takes
    # the plain-XLA fallback path by design — verify the gate works.
    small = PairInfoOpBlock(32, 8, k_small)
    xs = jax.random.normal(jax.random.PRNGKey(1), (2, 8, 32), jnp.float32)
    for prim in PAIR_INFO_PRIMITIVES:
        ys = small(xs, prim)
        jax.block_until_ready(ys)
        assert ys.shape == xs.shape

    print("KERNEL_OK")
</pallas_src>

<mosaic_0001>
module attributes {stable_mosaic.version = 11 : i64} {
  func.func @_fc_kernel(%arg0: i32, %arg1: memref<128x128xf32, #tpu.memory_space<vmem>>, %arg2: memref<128x128xbf16, #tpu.memory_space<vmem>>, %arg3: memref<1x128xf32, #tpu.memory_space<vmem>>, %arg4: memref<128x128xf32, #tpu.memory_space<vmem>>) attributes {dimension_semantics = [#tpu.dimension_semantics<parallel>], iteration_bounds = array<i64: 2>, scalar_prefetch = 0 : i64, scratch_operands = 0 : i64, tpu.core_type = #tpu.core_type<tc>, window_params = [{transform_indices = @transform_0, window_bounds = array<i64: 128, 128>}, {pipeline_mode = #tpu.pipeline_mode<synchronous>, transform_indices = @transform_1, window_bounds = array<i64: 128, 128>}, {pipeline_mode = #tpu.pipeline_mode<synchronous>, transform_indices = @transform_2, window_bounds = array<i64: 1, 128>}, {transform_indices = @transform_3, window_bounds = array<i64: 128, 128>}]} {
    %c0 = arith.constant 0 : index
    %c0_0 = arith.constant 0 : index
    %0 = vector.load %arg1[%c0, %c0_0] : memref<128x128xf32, #tpu.memory_space<vmem>>, vector<128x128xf32>
    %1 = arith.truncf %0 : vector<128x128xf32> to vector<128x128xbf16>
    %c0_1 = arith.constant 0 : index
    %c0_2 = arith.constant 0 : index
    %2 = vector.load %arg2[%c0_1, %c0_2] : memref<128x128xbf16, #tpu.memory_space<vmem>>, vector<128x128xbf16>
    %cst = arith.constant dense<0.000000e+00> : vector<128x128xf32>
    %3 = tpu.matmul %1, %2, %cst {dimension_numbers = #tpu.dot_dimension_numbers<[1], [0], [0], [1], [0, 0, 1, 1], [], []>} : vector<128x128xbf16>, vector<128x128xbf16>, vector<128x128xf32> -> vector<128x128xf32>
    %c0_3 = arith.constant 0 : index
    %c0_4 = arith.constant 0 : index
    %4 = vector.load %arg3[%c0_3, %c0_4] : memref<1x128xf32, #tpu.memory_space<vmem>>, vector<1x128xf32>
    %5 = vector.broadcast %4 : vector<1x128xf32> to vector<128x128xf32>
    %6 = arith.addf %3, %5 : vector<128x128xf32>
    %c0_5 = arith.constant 0 : index
    %c0_6 = arith.constant 0 : index
    %7 = vector.load %arg4[%c0_5, %c0_6] : memref<128x128xf32, #tpu.memory_space<vmem>>, vector<128x128xf32>
    tpu.vector_store %arg4[%c0_5, %c0_6], %6 {strides = array<i32>} : memref<128x128xf32, #tpu.memory_space<vmem>>, vector<128x128xf32>,
    return
  }
  func.func @transform_0(%arg0: i32) -> (i32, i32) {
    %c0_i32 = arith.constant 0 : i32
    %c0_i32_0 = arith.constant 0 : i32
    return %arg0, %c0_i32 : i32, i32
  }
  func.func @transform_1(%arg0: i32) -> (i32, i32) {
    %c0_i32 = arith.constant 0 : i32
    %c0_i32_0 = arith.constant 0 : i32
    %c0_i32_1 = arith.constant 0 : i32
    return %c0_i32, %c0_i32_0 : i32, i32
  }
  func.func @transform_2(%arg0: i32) -> (i32, i32) {
    %c0_i32 = arith.constant 0 : i32
    %c0_i32_0 = arith.constant 0 : i32
    %c0_i32_1 = arith.constant 0 : i32
    return %c0_i32, %c0_i32_0 : i32, i32
  }
  func.func @transform_3(%arg0: i32) -> (i32, i32) {
    %c0_i32 = arith.constant 0 : i32
    %c0_i32_0 = arith.constant 0 : i32
    return %arg0, %c0_i32 : i32, i32
  }
}

</mosaic_0001>

<llo_original>
// kernel: tpu_custom_call.1
$region0: #{tpu_custom_call.1}
  #allocation0 [shape = 'u32[]', space=smem, size = 0x4, offset = 0x4, fixed_abs, tag = 'smem constant byte address 0x4 - core index']
  #allocation1 [shape = 'u32[144,128]{1,0:T(1,128)}', space=vmem, size = 0x12000, scoped, tag = 'internal scratch']
  %s0 = inlined_call_operand.hbm [shape: f32[256,128], index: 0, kind: input, shape index: {}]
  %s1 = inlined_call_operand.hbm [shape: bf16[128,128], index: 1, kind: input, shape index: {}]
  %s2 = inlined_call_operand.vmem [shape: f32[1,128], index: 2, kind: input, shape index: {}]
  %s3 = inlined_call_operand.hbm [shape: f32[256,128], index: 3, kind: output, shape index: {}]
  %s4 = sld [smem:[#allocation0]]
  $region53: #{tpu_custom_call.1} parent=0
    _
  %s6 = ssub.s32 1, %s4
  %s7 = scalar_select 0, %s6, %s4
  $region1: #{tpu_custom_call.1} parent=0
    #allocation2 [shape = 'u8[131072]{0}', space=vmem, size = 0x20000, scoped, tag = 'input window, operand 0']
    #allocation3 [shape = 's32[2]{0}', space=sflag, size = 0x8, scoped, tag = 'scoped memory for tpu_custom_call.1']
    #allocation4 [shape = 's32[2]{0}', space=sflag, size = 0x8, scoped, tag = 'scoped memory for tpu_custom_call.1']
    #allocation5 [shape = 'u8[32768]{0}', space=vmem, size = 0x8000, scoped, tag = 'input window, operand 1, single buffered']
    #allocation6 [shape = 's32[1]{0}', space=sflag, size = 0x4, scoped, tag = 'scoped memory for tpu_custom_call.1']
    #allocation7 [shape = 'u8[131072]{0}', space=vmem, size = 0x20000, scoped, tag = 'output window, operand 0']
    %8 = vsyncpa [#allocation3], 0
    %s9 = scalar_lea.sflag [#allocation3], 1
    %10 = vsyncpa %s9, 0
    %11 = vsyncpa [#allocation6], 0
    %12 = vsyncpa [#allocation4], 0
    %s13 = scalar_lea.sflag [#allocation4], 1
    %14 = vsyncpa %s13, 0
    loop: start=0, step=1, limit=4
    $region2: #{tpu_custom_call.1} parent=1 // loop_pre_header
      _
    $region3: #{tpu_custom_call.1} parent=1 // loop_header
      %s16 = sphi 0, %s20
      %p17 = scmp.ge.s32.totalorder %s16, 4
      %s26 = sphi 0, %s28
      %s29 = sphi 0, %s26
      %s30 = sphi 0, %s29
      %s46 = sphi 0, %s30
      %s50 = sphi 0, %s50
      %s52 = sphi 0, %s50
      %s53 = sphi 0, %s52
      %s67 = sphi 0, %s53
      %s71 = sphi 0, %s71
      %s73 = sphi 0, %s71
      %s74 = sphi 0, %s73
      %s88 = sphi 0, %s74
      %s94 = sphi 0, %s96
      %s97 = sphi 0, %s94
      %s98 = sphi 0, %s97
      %s114 = sphi 0, %s98
    $region4: #{tpu_custom_call.1} parent=1 // loop_header_branch
      %19 = sbr.rel (%p17) target = $region8
    $region5: #{tpu_custom_call.1} parent=1 // loop_body
      %s21 = ssub.s32 %s16, 1
      %s22 = ssub.s32 %s16, 2
      %s23 = sadd.s32 %s16, 1
      %s24 = ssub.s32 %s16, %s23
      %p25 = scmp.eq.s32.totalorder %s24, 0
      %s27 = sadd.s32 %s26, 1
      %s28 = scalar_select %p25, %s26, %s27
      %p31 = pneg %p25
      %p32 = scmp.eq.s32.totalorder %s16, 1
      %p33 = por %p31, %p32
      %p34 = scmp.ne.s32.totalorder %s26, %s29
      %p35 = scmp.eq.s32.totalorder %s16, 0
      %p36 = por %p34, %p35
      %p37 = scmp.ne.s32.totalorder %s26, %s29
      %p38 = scmp.eq.s32.totalorder %s21, 1
      %p39 = por %p37, %p38
      %p40 = scmp.ne.s32.totalorder %s29, %s30
      %p41 = scmp.eq.s32.totalorder %s21, 0
      %p42 = por %p40, %p41
      %p43 = scmp.ne.s32.totalorder %s29, %s30
      %p44 = scmp.eq.s32.totalorder %s22, 1
      %p45 = por %p43, %p44
      %p47 = scmp.ne.s32.totalorder %s30, %s46
      %p48 = scmp.eq.s32.totalorder %s22, 0
      %p49 = por %p47, %p48
      %s51 = sadd.s32 %s50, 1
      %p54 = scmp.eq.s32.totalorder %s16, 1
      %p55 = scmp.ne.s32.totalorder %s50, %s52
      %p56 = scmp.eq.s32.totalorder %s16, 0
      %p57 = por %p55, %p56
      %p58 = scmp.ne.s32.totalorder %s50, %s52
      %p59 = scmp.eq.s32.totalorder %s21, 1
      %p60 = por %p58, %p59
      %p61 = scmp.ne.s32.totalorder %s52, %s53
      %p62 = scmp.eq.s32.totalorder %s21, 0
      %p63 = por %p61, %p62
      %p64 = scmp.ne.s32.totalorder %s52, %s53
      %p65 = scmp.eq.s32.totalorder %s22, 1
      %p66 = por %p64, %p65
      %p68 = scmp.ne.s32.totalorder %s53, %s67
      %p69 = scmp.eq.s32.totalorder %s22, 0
      %p70 = por %p68, %p69
      %s72 = sadd.s32 %s71, 1
      %p75 = scmp.eq.s32.totalorder %s16, 1
      %p76 = scmp.ne.s32.totalorder %s71, %s73
      %p77 = scmp.eq.s32.totalorder %s16, 0
      %p78 = por %p76, %p77
      %p79 = scmp.ne.s32.totalorder %s71, %s73
      %p80 = scmp.eq.s32.totalorder %s21, 1
      %p81 = por %p79, %p80
      %p82 = scmp.ne.s32.totalorder %s73, %s74
      %p83 = scmp.eq.s32.totalorder %s21, 0
      %p84 = por %p82, %p83
      %p85 = scmp.ne.s32.totalorder %s73, %s74
      %p86 = scmp.eq.s32.totalorder %s22, 1
      %p87 = por %p85, %p86
      %p89 = scmp.ne.s32.totalorder %s74, %s88
      %p90 = scmp.eq.s32.totalorder %s22, 0
      %p91 = por %p89, %p90
      %s92 = ssub.s32 %s16, %s23
      %p93 = scmp.eq.s32.totalorder %s92, 0
      %s95 = sadd.s32 %s94, 1
      %s96 = scalar_select %p93, %s94, %s95
      %p99 = pneg %p93
      %p100 = scmp.eq.s32.totalorder %s16, 1
      %p101 = por %p99, %p100
      %p102 = scmp.ne.s32.totalorder %s94, %s97
      %p103 = scmp.eq.s32.totalorder %s16, 0
      %p104 = por %p102, %p103
      %p105 = scmp.ne.s32.totalorder %s94, %s97
      %p106 = scmp.eq.s32.totalorder %s21, 1
      %p107 = por %p105, %p106
      %p108 = scmp.ne.s32.totalorder %s97, %s98
      %p109 = scmp.eq.s32.totalorder %s21, 0
      %p110 = por %p108, %p109
      %p111 = scmp.ne.s32.totalorder %s97, %s98
      %p112 = scmp.eq.s32.totalorder %s22, 1
      %p113 = por %p111, %p112
      %p115 = scmp.ne.s32.totalorder %s98, %s114
      %p116 = scmp.eq.s32.totalorder %s22, 0
      %p117 = por %p115, %p116
      %p118 = scmp.le.s32.totalorder 1, %s16
      %p119 = scmp.lt.s32.totalorder %s16, 3
      %p120 = pnand %p118, %p119
      %p121 = pneg %p120
      // Predicated region
      $region9: #{tpu_custom_call.1} parent=5 // pred_check
        _
      $region10: #{tpu_custom_call.1} parent=5 // pred_check_branch
        %123 = sbr.rel (%p120) target = $region12
      $region11: #{tpu_custom_call.1} parent=5 // pred_region
        %s124 = ssub.s32 %s16, 1
        // Predicated region
        $region13: #{tpu_custom_call.1} parent=11 // pred_check
          %p125 = pneg %p63
        $region14: #{tpu_custom_call.1} parent=11 // pred_check_branch
          %127 = sbr.rel (%p125) target = $region16
        $region15: #{tpu_custom_call.1} parent=11 // pred_region
          %s129 = ssub.s32 1024, 1024
          %130 = vsyncadd [#allocation6], %s129
          %s131 = sshll.u32 [#allocation5], 4
          %s132 = int_to_ptr.vmem [resolvable:$true] %s131
          %137 = dma.hbm_to_vmem [thread:$0]  %s1, 1024, %s132, [#allocation6], 64, 64, 4
        $region16: #{tpu_custom_call.1} parent=11 // pred_fallthru
          _
        // Predicated region
        $region17: #{tpu_custom_call.1} parent=11 // pred_check
          %p138 = pneg %p84
        $region18: #{tpu_custom_call.1} parent=11 // pred_check_branch
          %140 = sbr.rel (%p138) target = $region20
        $region19: #{tpu_custom_call.1} parent=11 // pred_region
          _
        $region20: #{tpu_custom_call.1} parent=11 // pred_fallthru
          _
      $region12: #{tpu_custom_call.1} parent=5 // pred_fallthru
        _
      %p141 = scmp.lt.s32.totalorder %s16, 2
      // Predicated region
      $region21: #{tpu_custom_call.1} parent=5 // pred_check
        %p142 = pneg %p141
      $region22: #{tpu_custom_call.1} parent=5 // pred_check_branch
        %144 = sbr.rel (%p142) target = $region24
      $region23: #{tpu_custom_call.1} parent=5 // pred_region
        // Predicated region
        $region25: #{tpu_custom_call.1} parent=23 // pred_check
          %p145 = pneg %p36
        $region26: #{tpu_custom_call.1} parent=23 // pred_check_branch
          %147 = sbr.rel (%p145) target = $region28
        $region27: #{tpu_custom_call.1} parent=23 // pred_region
          %s148 = sand.u32 %s26, 1
          %s149 = scalar_lea.sflag [#allocation3], %s148
          %s150 = sand.u32 %s26, 1
          %s151 = smul.addr %s150, 128
          %s152 = scalar_lea.vmem [#allocation2], %s151
          %s153 = smul.u32 16, %s16
          %s155 = ssub.s32 2048, 2048
          %156 = vsyncadd %s149, %s155
          %s157 = smul.addr %s153, 128
          %s158 = scalar_lea.hbm %s0, %s157
          %s159 = sshll.u32 %s152, 4
          %s160 = int_to_ptr.vmem [resolvable:$true] %s159
          %165 = dma.hbm_to_vmem [thread:$0]  %s158, 2048, %s160, %s149, 128, 128, 8
        $region28: #{tpu_custom_call.1} parent=23 // pred_fallthru
          _
      $region24: #{tpu_custom_call.1} parent=5 // pred_fallthru
        _
      %p166 = scmp.le.s32.totalorder 1, %s16
      %p167 = scmp.lt.s32.totalorder %s16, 3
      %p168 = pnand %p166, %p167
      %p169 = pneg %p168
      // Predicated region
      $region29: #{tpu_custom_call.1} parent=5 // pred_check
        _
      $region30: #{tpu_custom_call.1} parent=5 // pred_check_branch
        %171 = sbr.rel (%p168) target = $region32
      $region31: #{tpu_custom_call.1} parent=5 // pred_region
        %s172 = ssub.s32 %s16, 1
        %s173 = sand.u32 %s29, 1
        %s174 = scalar_lea.sflag [#allocation3], %s173
        %s175 = sand.u32 %s29, 1
        %s176 = smul.addr %s175, 128
        %s177 = scalar_lea.vmem [#allocation2], %s176
        // Predicated region
        $region33: #{tpu_custom_call.1} parent=31 // pred_check
          %p178 = pneg %p42
        $region34: #{tpu_custom_call.1} parent=31 // pred_check_branch
          %180 = sbr.rel (%p178) target = $region36
        $region35: #{tpu_custom_call.1} parent=31 // pred_region
          %181 = dma.done %s174, 2048
        $region36: #{tpu_custom_call.1} parent=31 // pred_fallthru
          _
        // Predicated region
        $region37: #{tpu_custom_call.1} parent=31 // pred_check
          %p182 = pneg %p63
        $region38: #{tpu_custom_call.1} parent=31 // pred_check_branch
          %184 = sbr.rel (%p182) target = $region40
        $region39: #{tpu_custom_call.1} parent=31 // pred_region
          %185 = dma.done [#allocation6], 1024
        $region40: #{tpu_custom_call.1} parent=31 // pred_fallthru
          _
        %s186 = sand.u32 %s29, 1
        %s187 = scalar_lea.sflag [#allocation3], %s186
        %s188 = sand.u32 %s29, 1
        %s189 = smul.addr %s188, 128
        %s190 = scalar_lea.vmem [#allocation2], %s189
        %p191 = pneg %p42
        %p192 = pneg %p39
        %p193 = pneg %p63
        %p194 = pneg %p60
        %p195 = pneg %p84
        %p196 = pneg %p81
        %p197 = pneg %p110
        %p198 = pneg %p107
        %s199 = sand.u32 %s97, 1
        %s200 = scalar_lea.sflag [#allocation4], %s199
        %s201 = sand.u32 %s97, 1
        %s202 = smul.addr %s201, 128
        %s203 = scalar_lea.vmem [#allocation7], %s202
        %s204 = smul.u32 16, %s21
        %s205 = smul.u32 16, %s21
        %v207 = vld [vmem:[%s177] sm:$0xff]
        %v208 = vld [vmem:[%s177 + $0x8] sm:$0xff]
        %v209 = vld [vmem:[%s177 + $0x10] sm:$0xff]
        %v210 = vld [vmem:[%s177 + $0x18] sm:$0xff]
        %v211 = vld [vmem:[%s177 + $0x20] sm:$0xff]
        %v212 = vld [vmem:[%s177 + $0x28] sm:$0xff]
        %v213 = vld [vmem:[%s177 + $0x30] sm:$0xff]
        %v214 = vld [vmem:[%s177 + $0x38] sm:$0xff]
        %v215 = vld [vmem:[%s177 + $0x40] sm:$0xff]
        %v216 = vld [vmem:[%s177 + $0x48] sm:$0xff]
        %v217 = vld [vmem:[%s177 + $0x50] sm:$0xff]
        %v218 = vld [vmem:[%s177 + $0x58] sm:$0xff]
        %v219 = vld [vmem:[%s177 + $0x60] sm:$0xff]
        %v220 = vld [vmem:[%s177 + $0x68] sm:$0xff]
        %v221 = vld [vmem:[%s177 + $0x70] sm:$0xff]
        %v222 = vld [vmem:[%s177 + $0x78] sm:$0xff]
        %v223 = vpack.c.bf16 %v208, %v207
        %v224 = vpack.c.bf16 %v210, %v209
        %v225 = vpack.c.bf16 %v212, %v211
        %v226 = vpack.c.bf16 %v214, %v213
        %v227 = vpack.c.bf16 %v216, %v215
        %v228 = vpack.c.bf16 %v218, %v217
        %v229 = vpack.c.bf16 %v220, %v219
        %v230 = vpack.c.bf16 %v222, %v221
        %v231 = vld [vmem:[#allocation5] sm:$0xf]
        %v232 = vld [vmem:[#allocation5 + $0x4] sm:$0xf]
        %v233 = vld [vmem:[#allocation5 + $0x8] sm:$0xf]
        %v234 = vld [vmem:[#allocation5 + $0xc] sm:$0xf]
        %v235 = vld [vmem:[#allocation5 + $0x10] sm:$0xf]
        %v236 = vld [vmem:[#allocation5 + $0x14] sm:$0xf]
        %v237 = vld [vmem:[#allocation5 + $0x18] sm:$0xf]
        %v238 = vld [vmem:[#allocation5 + $0x1c] sm:$0xf]
        %v239 = vld [vmem:[#allocation5 + $0x20] sm:$0xf]
        %v240 = vld [vmem:[#allocation5 + $0x24] sm:$0xf]
        %v241 = vld [vmem:[#allocation5 + $0x28] sm:$0xf]
        %v242 = vld [vmem:[#allocation5 + $0x2c] sm:$0xf]
        %v243 = vld [vmem:[#allocation5 + $0x30] sm:$0xf]
        %v244 = vld [vmem:[#allocation5 + $0x34] sm:$0xf]
        %v245 = vld [vmem:[#allocation5 + $0x38] sm:$0xf]
        %v246 = vld [vmem:[#allocation5 + $0x3c] sm:$0xf]
        %v247 = vld [vmem:[%s2] sm:$0x1]
        %v249 = vlaneseq
        %v250 = vshrl.u32 %v249, 7
        %v251 = vsub.s32 0, %v250
        %v252 = vrot.slane %v247, %v251
        %v270 = vunpack.c.l.b16 %v231
        %v271 = vunpack.c.l.b16 %v232
        %v272 = vunpack.c.l.b16 %v233
        %v273 = vunpack.c.l.b16 %v234
        %v274 = vunpack.c.l.b16 %v235
        %v275 = vunpack.c.l.b16 %v236
        %v276 = vunpack.c.l.b16 %v237
        %v277 = vunpack.c.l.b16 %v238
        %v278 = vunpack.c.l.b16 %v239
        %v279 = vunpack.c.l.b16 %v240
        %v280 = vunpack.c.l.b16 %v241
        %v281 = vunpack.c.l.b16 %v242
        %v282 = vunpack.c.l.b16 %v243
        %v283 = vunpack.c.l.b16 %v244
        %v284 = vunpack.c.l.b16 %v245
        %v285 = vunpack.c.l.b16 %v246
        %v286 = vpack.c.b16 %v271, %v270
        %v287 = vpack.c.b16 %v273, %v272
        %v288 = vpack.c.b16 %v275, %v274
        %v289 = vpack.c.b16 %v277, %v276
        %v290 = vpack.c.b16 %v279, %v278
        %v291 = vpack.c.b16 %v281, %v280
        %v292 = vpack.c.b16 %v283, %v282
        %v293 = vpack.c.b16 %v285, %v284
        %302 = vmatprep.subr.bf16.mxu0 0
        %303 = vmatpush1.bf16.msra.mxu0 %v293
        %304 = vmatprep.subr.bf16.mxu0 0
        %305 = vmatpush1.bf16.msra.mxu0 %v292
        %306 = vmatprep.subr.bf16.mxu0 0
        %307 = vmatpush1.bf16.msra.mxu0 %v291
        %308 = vmatprep.subr.bf16.mxu0 0
        %309 = vmatpush1.bf16.msra.mxu0 %v290
        %310 = vmatprep.subr.bf16.mxu0 0
        %311 = vmatpush1.bf16.msra.mxu0 %v289
        %312 = vmatprep.subr.bf16.mxu0 0
        %313 = vmatpush1.bf16.msra.mxu0 %v288
        %314 = vmatprep.subr.bf16.mxu0 0
        %315 = vmatpush1.bf16.msra.mxu0 %v287
        %316 = vmatprep.subr.bf16.mxu0 0
        %317 = vmatpush1.bf16.msra.mxu0 %v286
        %318 = vmatprep.subr.bf16.mxu0 0
        %319 = vmatpush2.bf16.msra.mxu0 0
        %320 = vmatprep.subr.bf16.mxu0 0
        %321 = vmatpush2.bf16.msra.mxu0 0
        %322 = vmatprep.subr.bf16.mxu0 0
        %323 = vmatpush2.bf16.msra.mxu0 0
        %324 = vmatprep.subr.bf16.mxu0 0
        %325 = vmatpush2.bf16.msra.mxu0 0
        %326 = vmatprep.subr.bf16.mxu0 0
        %327 = vmatpush2.bf16.msra.mxu0 0
        %328 = vmatprep.subr.bf16.mxu0 0
        %329 = vmatpush2.bf16.msra.mxu0 0
        %330 = vmatprep.subr.bf16.mxu0 0
        %331 = vmatpush2.bf16.msra.mxu0 0
        %332 = vmatprep.subr.bf16.mxu0 0
        %333 = vmatpush2.bf16.msra.mxu0 0
        %334 = vmatprep.mubr.bf16.mxu0 0
        %335 = vmatmul.mubr.bf16.gmra.mxu0 %v223
        %v336 = vpop.f32.mrf.mxu0
        %v337 = vadd.f32 %v252, %v336
        %v338 = vpop.f32.mrf.mxu0
        %v339 = vpop.f32.mrf.mxu0
        %v340 = vadd.f32 %v252, %v339
        %v341 = vpop.f32.mrf.mxu0
        %342 = vmatprep.mubr.bf16.mxu0 0
        %343 = vmatmul.mubr.bf16.gmra.mxu0 %v224
        %v344 = vpop.f32.mrf.mxu0
        %v345 = vadd.f32 %v252, %v344
        %v346 = vpop.f32.mrf.mxu0
        %v347 = vpop.f32.mrf.mxu0
        %v348 = vadd.f32 %v252, %v347
        %v349 = vpop.f32.mrf.mxu0
        %350 = vmatprep.mubr.bf16.mxu0 0
        %351 = vmatmul.mubr.bf16.gmra.mxu0 %v225
        %v352 = vpop.f32.mrf.mxu0
        %v353 = vadd.f32 %v252, %v352
        %v354 = vpop.f32.mrf.mxu0
        %v355 = vpop.f32.mrf.mxu0
        %v356 = vadd.f32 %v252, %v355
        %v357 = vpop.f32.mrf.mxu0
        %358 = vmatprep.mubr.bf16.mxu0 0
        %359 = vmatmul.mubr.bf16.gmra.mxu0 %v226
        %v360 = vpop.f32.mrf.mxu0
        %v361 = vadd.f32 %v252, %v360
        %v362 = vpop.f32.mrf.mxu0
        %v363 = vpop.f32.mrf.mxu0
        %v364 = vadd.f32 %v252, %v363
        %v365 = vpop.f32.mrf.mxu0
        %366 = vmatprep.mubr.bf16.mxu0 0
        %367 = vmatmul.mubr.bf16.gmra.mxu0 %v227
        %v368 = vpop.f32.mrf.mxu0
        %v369 = vadd.f32 %v252, %v368
        %v370 = vpop.f32.mrf.mxu0
        %v371 = vpop.f32.mrf.mxu0
        %v372 = vadd.f32 %v252, %v371
        %v373 = vpop.f32.mrf.mxu0
        %374 = vmatprep.mubr.bf16.mxu0 0
        %375 = vmatmul.mubr.bf16.gmra.mxu0 %v228
        %v376 = vpop.f32.mrf.mxu0
        %v377 = vadd.f32 %v252, %v376
        %v378 = vpop.f32.mrf.mxu0
        %v379 = vpop.f32.mrf.mxu0
        %v380 = vadd.f32 %v252, %v379
        %v381 = vpop.f32.mrf.mxu0
        %382 = vmatprep.mubr.bf16.mxu0 0
        %383 = vmatmul.mubr.bf16.gmra.mxu0 %v229
        %v384 = vpop.f32.mrf.mxu0
        %v385 = vadd.f32 %v252, %v384
        %v386 = vpop.f32.mrf.mxu0
        %v387 = vpop.f32.mrf.mxu0
        %v388 = vadd.f32 %v252, %v387
        %v389 = vpop.f32.mrf.mxu0
        %390 = vmatprep.mubr.bf16.mxu0 0
        %391 = vmatmul.mubr.bf16.gmra.mxu0 %v230
        %v392 = vpop.f32.mrf.mxu0
        %v393 = vadd.f32 %v252, %v392
        %v394 = vpop.f32.mrf.mxu0
        %v395 = vpop.f32.mrf.mxu0
        %v396 = vadd.f32 %v252, %v395
        %v397 = vpop.f32.mrf.mxu0
        %398 = vdwg.mxu0
        %399 = vst [vmem:[%s203] sm:$0xff] %v337
        %400 = vst [vmem:[%s203 + $0x8] sm:$0xff] %v340
        %401 = vst [vmem:[%s203 + $0x10] sm:$0xff] %v345
        %402 = vst [vmem:[%s203 + $0x18] sm:$0xff] %v348
        %403 = vst [vmem:[%s203 + $0x20] sm:$0xff] %v353
        %404 = vst [vmem:[%s203 + $0x28] sm:$0xff] %v356
        %405 = vst [vmem:[%s203 + $0x30] sm:$0xff] %v361
        %406 = vst [vmem:[%s203 + $0x38] sm:$0xff] %v364
        %407 = vst [vmem:[%s203 + $0x40] sm:$0xff] %v369
        %408 = vst [vmem:[%s203 + $0x48] sm:$0xff] %v372
        %409 = vst [vmem:[%s203 + $0x50] sm:$0xff] %v377
        %410 = vst [vmem:[%s203 + $0x58] sm:$0xff] %v380
        %411 = vst [vmem:[%s203 + $0x60] sm:$0xff] %v385
        %412 = vst [vmem:[%s203 + $0x68] sm:$0xff] %v388
        %413 = vst [vmem:[%s203 + $0x70] sm:$0xff] %v393
        %414 = vst [vmem:[%s203 + $0x78] sm:$0xff] %v396
        %s415 = sand.u32 %s97, 1
        %s416 = scalar_lea.sflag [#allocation4], %s415
        %s417 = sand.u32 %s97, 1
        %s418 = smul.addr %s417, 128
        %s419 = scalar_lea.vmem [#allocation7], %s418
        // Predicated region
        $region41: #{tpu_custom_call.1} parent=31 // pred_check
          %p420 = pneg %p107
        $region42: #{tpu_custom_call.1} parent=31 // pred_check_branch
          %422 = sbr.rel (%p420) target = $region44
        $region43: #{tpu_custom_call.1} parent=31 // pred_region
          %s423 = smul.u32 16, %s21
          %s425 = ssub.s32 2048, 2048
          %426 = vsyncadd %s416, %s425
          %s427 = smul.addr %s423, 128
          %s428 = scalar_lea.hbm %s3, %s427
          %s429 = sshll.u32 %s419, 4
          %s430 = int_to_ptr.vmem [resolvable:$true] %s429
          %435 = dma.vmem_to_hbm [thread:$0]  %s430, 2048, %s428, %s416, 128, 128, 8
        $region44: #{tpu_custom_call.1} parent=31 // pred_fallthru
          _
      $region32: #{tpu_custom_call.1} parent=5 // pred_fallthru
        _
      %p436 = scmp.le.s32.totalorder 2, %s16
      // Predicated region
      $region45: #{tpu_custom_call.1} parent=5 // pred_check
        %p437 = pneg %p436
      $region46: #{tpu_custom_call.1} parent=5 // pred_check_branch
        %439 = sbr.rel (%p437) target = $region48
      $region47: #{tpu_custom_call.1} parent=5 // pred_region
        %s440 = ssub.s32 %s16, 2
        // Predicated region
        $region49: #{tpu_custom_call.1} parent=47 // pred_check
          %p441 = pneg %p113
        $region50: #{tpu_custom_call.1} parent=47 // pred_check_branch
          %443 = sbr.rel (%p441) target = $region52
        $region51: #{tpu_custom_call.1} parent=47 // pred_region
          %s444 = sand.u32 %s98, 1
          %s445 = scalar_lea.sflag [#allocation4], %s444
          %s446 = sand.u32 %s98, 1
          %s447 = smul.addr %s446, 128
          %s448 = scalar_lea.vmem [#allocation7], %s447
          %449 = dma.done %s445, 2048
        $region52: #{tpu_custom_call.1} parent=47 // pred_fallthru
          _
      $region48: #{tpu_custom_call.1} parent=5 // pred_fallthru
        _
    $region6: #{tpu_custom_call.1} parent=1 // loop_footer
      %s20 = sadd.s32 1, %s16
    $region7: #{tpu_custom_call.1} parent=1 // loop_footer_branch
      %15 = sbr.rel target = $region3
    $region8: #{tpu_custom_call.1} parent=1 // loop_exit
      _
    %450 = vsyncpa [#allocation3], 1
    %s451 = scalar_lea.sflag [#allocation3], 1
    %452 = vsyncpa %s451, 1
    %453 = vsyncpa [#allocation6], 1
    %454 = vsyncpa [#allocation4], 1
    %s455 = scalar_lea.sflag [#allocation4], 1
    %456 = vsyncpa %s455, 1

</llo_original>
